<compile_context>
chip_gen: v7x
topology: tpu7x:2x2x1
jax: 0.10.0
libtpu: 0.0.40
codegen_flags: <defaults>
</compile_context>

<pallas_src>
import functools
import math

import jax
import jax.numpy as jnp
from jax.experimental import pallas as pl
from jax.experimental.pallas import tpu as pltpu

BOUND_INIT = 0.005
LEAKY_SLOPE = 0.01  # torch.nn.functional.leaky_relu default negative_slope

H1 = 400         # logical fc1 width (PyTorch module)
H1_PAD = 512     # lane-aligned padded fc1 width (exact, zero-padded)
H2 = 256
MAX_TB = 2048    # batch-tile cap (multiple of 256); ~8 MiB/step working set
MIN_TILE = 256   # batch-tile granularity (sublane/lane and MXU-M friendly)


# ---------------------------------------------------------------------------
# Chip detection (Python-level, trace-time constants).
# ---------------------------------------------------------------------------
@functools.lru_cache(maxsize=None)
def _chip_kind():
    try:
        return jax.devices()[0].device_kind.lower()
    except Exception:  # pragma: no cover - no accelerator visible
        return ""


def _use_bf16_activations():
    # v6e / v7x have bf16-native VPU/EUP; v5e and earlier do not (emulated bf16
    # elementwise would be slower there), so keep f32 elementwise on those.
    kind = _chip_kind()
    return ("v6" in kind) or ("v7" in kind)


def _num_tensorcores():
    # v7x has 2 TensorCores per chip; earlier generations have 1.
    return 2 if "v7" in _chip_kind() else 1


def _round_up(n, m):
    return ((n + m - 1) // m) * m


def _pick_batch_tile(B, n_tc):
    """Rows per grid step: big tiles (low grid overhead), >= n_tc blocks."""
    if B <= MIN_TILE:
        return B  # single full-extent block; grid overhead would dominate
    tb = min(MAX_TB, _round_up(pl.cdiv(B, n_tc), MIN_TILE))
    if n_tc == 1 and tb >= B:
        return B  # single full-extent block, no ragged edge
    if n_tc > 1:
        steps = pl.cdiv(B, tb)
        if steps > 1 and steps % n_tc:
            # Nudge toward an even number of blocks so both v7x TCs stay busy.
            tb2 = _round_up(pl.cdiv(B, steps + 1), MIN_TILE)
            if tb2 > 0 and pl.cdiv(B, tb2) % n_tc == 0:
                tb = tb2
    return tb


# ---------------------------------------------------------------------------
# Kernel
# ---------------------------------------------------------------------------
def _leaky_relu(x):
    # Identical to leaky_relu for 0 < slope < 1; lowers to mul+max (2 VALU ops).
    return jnp.maximum(x, LEAKY_SLOPE * x)


def actor_kernel(x_ref, w1_ref, b1_ref, w2_ref, b2_ref, w3_ref, b3_ref,
                 o_ref, *, action_lim):
    # Activation dtype for the elementwise chain is carried by b1/b2:
    # bf16 on v6e/v7x, f32 on v5e.  Matmuls always accumulate in f32.
    act_dtype = b1_ref.dtype

    x = x_ref[...].astype(jnp.bfloat16)
    h = jnp.dot(x, w1_ref[...], preferred_element_type=jnp.float32)
    h = _leaky_relu(h.astype(act_dtype) + b1_ref[...])

    h = jnp.dot(h.astype(jnp.bfloat16), w2_ref[...],
                preferred_element_type=jnp.float32)
    h = _leaky_relu(h.astype(act_dtype) + b2_ref[...])

    h = jnp.dot(h.astype(jnp.bfloat16), w3_ref[...],
                preferred_element_type=jnp.float32)
    a = jnp.tanh(h + b3_ref[...])                 # f32, tiny (tb x action_dim)
    o_ref[...] = (action_lim * a).astype(o_ref.dtype)


# ---------------------------------------------------------------------------
# One-time parameter preparation (hoisted out of the forward pass).
# ---------------------------------------------------------------------------
def prepare_actor_params(params, use_bf16_activations=None):
    """Convert logical params to kernel layout ONCE (e.g. at init / after each
    optimizer step), not per forward call.

    Weights -> bf16, (in, out) layout; fc1/fc2 zero-padded h1 400 -> 512.
    b1/b2 -> activation dtype (bf16 on v6e/v7x, f32 on v5e); b3 -> f32.
    """
    if use_bf16_activations is None:
        use_bf16_activations = _use_bf16_activations()
    act_dtype = jnp.bfloat16 if use_bf16_activations else jnp.float32

    w1, b1, w2, b2, w3, b3 = params
    state_dim = w1.shape[0]

    w1p = jnp.zeros((state_dim, H1_PAD), jnp.bfloat16)
    w1p = w1p.at[:, :H1].set(w1.astype(jnp.bfloat16))
    b1p = jnp.zeros((1, H1_PAD), act_dtype).at[:, :H1].set(b1.astype(act_dtype))
    w2p = jnp.zeros((H1_PAD, H2), jnp.bfloat16)
    w2p = w2p.at[:H1, :].set(w2.astype(jnp.bfloat16))
    b2p = b2.astype(act_dtype)
    w3p = w3.astype(jnp.bfloat16)
    b3p = b3.astype(jnp.float32)
    return (w1p, b1p, w2p, b2p, w3p, b3p)


# ---------------------------------------------------------------------------
# Forward wrapper
# ---------------------------------------------------------------------------
@functools.partial(jax.jit, static_argnames="action_lim")
def actor_forward(x, kernel_params, action_lim):
    """x: (B, state_dim) f32.  kernel_params: output of prepare_actor_params."""
    w1p, b1p, w2p, b2p, w3p, b3p = kernel_params
    x = x.astype(jnp.float32)
    B, state_dim = x.shape
    action_dim = w3p.shape[1]

    n_tc = _num_tensorcores()
    tb = _pick_batch_tile(B, n_tc)
    grid = (pl.cdiv(B, tb),)   # ragged last block handled by Pallas masking

    def resident(shape):
        # Constant index_map -> DMA'd once, stays VMEM-resident across steps.
        return pl.BlockSpec(shape, lambda i: tuple(0 for _ in shape))

    flops = 2 * B * (state_dim * H1_PAD + H1_PAD * H2 + H2 * action_dim)
    bytes_accessed = (
        x.size * 4 + B * action_dim * 4
        + (w1p.size + w2p.size + w3p.size) * 2
        + b1p.size * b1p.dtype.itemsize
        + b2p.size * b2p.dtype.itemsize
        + b3p.size * 4)
    cost = pl.CostEstimate(flops=flops,
                           transcendentals=B * action_dim,
                           bytes_accessed=bytes_accessed)

    kernel = functools.partial(actor_kernel, action_lim=float(action_lim))
    return pl.pallas_call(
        kernel,
        out_shape=jax.ShapeDtypeStruct((B, action_dim), jnp.float32),
        grid=grid,
        in_specs=[
            pl.BlockSpec((tb, state_dim), lambda i: (i, 0)),
            resident(w1p.shape), resident(b1p.shape),
            resident(w2p.shape), resident(b2p.shape),
            resident(w3p.shape), resident(b3p.shape),
        ],
        out_specs=pl.BlockSpec((tb, action_dim), lambda i: (i, 0)),
        compiler_params=pltpu.CompilerParams(
            dimension_semantics=("parallel",)),
        cost_estimate=cost,
    )(x, w1p, b1p, w2p, b2p, w3p, b3p)


# ---------------------------------------------------------------------------
# Init + pure-JAX reference (mirror of the PyTorch module)
# ---------------------------------------------------------------------------
def init_actor_params(key, state_dim, action_dim):
    """Deterministic synthetic init mirroring the PyTorch module's __init__.

    fc1.weight ~ Normal(0, 1/sqrt(400))   (fc_init with init = out_features)
    fc2.weight ~ Normal(0, 1/sqrt(256))
    fc3.weight ~ Uniform(-BOUND_INIT, BOUND_INIT)
    biases     ~ Uniform(-1/sqrt(fan_in), 1/sqrt(fan_in))  (nn.Linear default)

    Weights are stored as (in_features, out_features) for x @ W.
    """
    k = jax.random.split(key, 6)
    h1, h2 = H1, H2

    w1 = (1.0 / math.sqrt(h1)) * jax.random.normal(k[0], (state_dim, h1), jnp.float32)
    b1 = jax.random.uniform(k[1], (1, h1), jnp.float32,
                            -1.0 / math.sqrt(state_dim), 1.0 / math.sqrt(state_dim))

    w2 = (1.0 / math.sqrt(h2)) * jax.random.normal(k[2], (h1, h2), jnp.float32)
    b2 = jax.random.uniform(k[3], (1, h2), jnp.float32,
                            -1.0 / math.sqrt(h1), 1.0 / math.sqrt(h1))

    w3 = jax.random.uniform(k[4], (h2, action_dim), jnp.float32,
                            -BOUND_INIT, BOUND_INIT)
    b3 = jax.random.uniform(k[5], (1, action_dim), jnp.float32,
                            -1.0 / math.sqrt(h2), 1.0 / math.sqrt(h2))
    return (w1, b1, w2, b2, w3, b3)


def actor_reference(x, params, action_lim):
    """Pure-JAX f32 reference of the PyTorch forward pass."""
    w1, b1, w2, b2, w3, b3 = params
    h = jnp.maximum(x @ w1 + b1, LEAKY_SLOPE * (x @ w1 + b1))
    h = jnp.maximum(h @ w2 + b2, LEAKY_SLOPE * (h @ w2 + b2))
    return action_lim * jnp.tanh(h @ w3 + b3)


if __name__ == "__main__":
    state_dim = 16
    action_dim = 4
    action_lim = 2.0

    key = jax.random.PRNGKey(0)
    k_param, k_x, k_x2 = jax.random.split(key, 3)
    params = init_actor_params(k_param, state_dim, action_dim)
    kparams = prepare_actor_params(params)   # one-time prep, off the hot path

    # Small inference-style batch (single full-extent block path).
    x = jax.random.normal(k_x, (2, state_dim), jnp.float32)
    out = jax.block_until_ready(actor_forward(x, kparams, action_lim))
    ref = actor_reference(x, params, action_lim)
    assert out.shape == (2, action_dim), out.shape
    # bf16 weights / activations at the MXU -> relaxed tolerance vs f32 ref.
    assert jnp.allclose(out, ref, atol=2e-2, rtol=2e-2), (out, ref)

    # Training-style batch that is not a multiple of the tile: exercises the
    # multi-block grid with a ragged (masked) last block and no wrapper pad.
    xb = jax.random.normal(k_x2, (2088, state_dim), jnp.float32)
    outb = jax.block_until_ready(actor_forward(xb, kparams, action_lim))
    refb = actor_reference(xb, params, action_lim)
    assert outb.shape == (2088, action_dim), outb.shape
    assert jnp.allclose(outb, refb, atol=2e-2, rtol=2e-2)

    print("KERNEL_OK")
</pallas_src>

<mosaic_0001>
module attributes {stable_mosaic.version = 11 : i64} {
  func.func @actor_kernel(%arg0: i32, %arg1: memref<2x16xf32, #tpu.memory_space<vmem>>, %arg2: memref<16x512xbf16, #tpu.memory_space<vmem>>, %arg3: memref<1x512xf32, #tpu.memory_space<vmem>>, %arg4: memref<512x256xbf16, #tpu.memory_space<vmem>>, %arg5: memref<1x256xf32, #tpu.memory_space<vmem>>, %arg6: memref<256x4xbf16, #tpu.memory_space<vmem>>, %arg7: memref<1x4xf32, #tpu.memory_space<vmem>>, %arg8: memref<2x4xf32, #tpu.memory_space<vmem>>) attributes {dimension_semantics = [#tpu.dimension_semantics<parallel>], iteration_bounds = array<i64: 1>, scalar_prefetch = 0 : i64, scratch_operands = 0 : i64, tpu.core_type = #tpu.core_type<tc>, window_params = [{transform_indices = @transform_0, window_bounds = array<i64: 2, 16>}, {pipeline_mode = #tpu.pipeline_mode<synchronous>, transform_indices = @transform_1, window_bounds = array<i64: 16, 512>}, {pipeline_mode = #tpu.pipeline_mode<synchronous>, transform_indices = @transform_2, window_bounds = array<i64: 1, 512>}, {pipeline_mode = #tpu.pipeline_mode<synchronous>, transform_indices = @transform_3, window_bounds = array<i64: 512, 256>}, {pipeline_mode = #tpu.pipeline_mode<synchronous>, transform_indices = @transform_4, window_bounds = array<i64: 1, 256>}, {pipeline_mode = #tpu.pipeline_mode<synchronous>, transform_indices = @transform_5, window_bounds = array<i64: 256, 4>}, {pipeline_mode = #tpu.pipeline_mode<synchronous>, transform_indices = @transform_6, window_bounds = array<i64: 1, 4>}, {transform_indices = @transform_7, window_bounds = array<i64: 2, 4>}]} {
    %c0 = arith.constant 0 : index
    %c0_0 = arith.constant 0 : index
    %0 = vector.load %arg1[%c0, %c0_0] : memref<2x16xf32, #tpu.memory_space<vmem>>, vector<2x16xf32>
    %1 = arith.truncf %0 : vector<2x16xf32> to vector<2x16xbf16>
    %c0_1 = arith.constant 0 : index
    %c0_2 = arith.constant 0 : index
    %2 = vector.load %arg2[%c0_1, %c0_2] : memref<16x512xbf16, #tpu.memory_space<vmem>>, vector<16x512xbf16>
    %cst = arith.constant dense<0.000000e+00> : vector<2x512xf32>
    %3 = tpu.matmul %1, %2, %cst {dimension_numbers = #tpu.dot_dimension_numbers<[1], [0], [0], [1], [0, 0, 1, 1], [], []>} : vector<2x16xbf16>, vector<16x512xbf16>, vector<2x512xf32> -> vector<2x512xf32>
    %c0_3 = arith.constant 0 : index
    %c0_4 = arith.constant 0 : index
    %4 = vector.load %arg3[%c0_3, %c0_4] : memref<1x512xf32, #tpu.memory_space<vmem>>, vector<1x512xf32>
    %5 = vector.broadcast %4 : vector<1x512xf32> to vector<2x512xf32>
    %6 = arith.addf %3, %5 : vector<2x512xf32>
    %cst_5 = arith.constant 0.00999999977 : f32
    %7 = vector.broadcast %cst_5 : f32 to vector<2x512xf32>
    %8 = arith.mulf %7, %6 : vector<2x512xf32>
    %9 = arith.maximumf %6, %8 : vector<2x512xf32>
    %10 = arith.truncf %9 : vector<2x512xf32> to vector<2x512xbf16>
    %c0_6 = arith.constant 0 : index
    %c0_7 = arith.constant 0 : index
    %11 = vector.load %arg4[%c0_6, %c0_7] : memref<512x256xbf16, #tpu.memory_space<vmem>>, vector<512x256xbf16>
    %cst_8 = arith.constant dense<0.000000e+00> : vector<2x256xf32>
    %12 = tpu.matmul %10, %11, %cst_8 {dimension_numbers = #tpu.dot_dimension_numbers<[1], [0], [0], [1], [0, 0, 1, 1], [], []>} : vector<2x512xbf16>, vector<512x256xbf16>, vector<2x256xf32> -> vector<2x256xf32>
    %c0_9 = arith.constant 0 : index
    %c0_10 = arith.constant 0 : index
    %13 = vector.load %arg5[%c0_9, %c0_10] : memref<1x256xf32, #tpu.memory_space<vmem>>, vector<1x256xf32>
    %14 = vector.broadcast %13 : vector<1x256xf32> to vector<2x256xf32>
    %15 = arith.addf %12, %14 : vector<2x256xf32>
    %cst_11 = arith.constant 0.00999999977 : f32
    %16 = vector.broadcast %cst_11 : f32 to vector<2x256xf32>
    %17 = arith.mulf %16, %15 : vector<2x256xf32>
    %18 = arith.maximumf %15, %17 : vector<2x256xf32>
    %19 = arith.truncf %18 : vector<2x256xf32> to vector<2x256xbf16>
    %c0_12 = arith.constant 0 : index
    %c0_13 = arith.constant 0 : index
    %20 = vector.load %arg6[%c0_12, %c0_13] : memref<256x4xbf16, #tpu.memory_space<vmem>>, vector<256x4xbf16>
    %cst_14 = arith.constant dense<0.000000e+00> : vector<2x4xf32>
    %21 = tpu.matmul %19, %20, %cst_14 {dimension_numbers = #tpu.dot_dimension_numbers<[1], [0], [0], [1], [0, 0, 1, 1], [], []>} : vector<2x256xbf16>, vector<256x4xbf16>, vector<2x4xf32> -> vector<2x4xf32>
    %c0_15 = arith.constant 0 : index
    %c0_16 = arith.constant 0 : index
    %22 = vector.load %arg7[%c0_15, %c0_16] : memref<1x4xf32, #tpu.memory_space<vmem>>, vector<1x4xf32>
    %23 = vector.broadcast %22 : vector<1x4xf32> to vector<2x4xf32>
    %24 = arith.addf %21, %23 : vector<2x4xf32>
    %25 = math.tanh %24 : vector<2x4xf32>
    %cst_17 = arith.constant 2.000000e+00 : f32
    %26 = vector.broadcast %cst_17 : f32 to vector<2x4xf32>
    %27 = arith.mulf %26, %25 : vector<2x4xf32>
    %c0_18 = arith.constant 0 : index
    %c0_19 = arith.constant 0 : index
    %28 = vector.load %arg8[%c0_18, %c0_19] : memref<2x4xf32, #tpu.memory_space<vmem>>, vector<2x4xf32>
    tpu.vector_store %arg8[%c0_18, %c0_19], %27 {strides = array<i32>} : memref<2x4xf32, #tpu.memory_space<vmem>>, vector<2x4xf32>,
    return
  }
  func.func @transform_0(%arg0: i32) -> (i32, i32) {
    %c0_i32 = arith.constant 0 : i32
    %c0_i32_0 = arith.constant 0 : i32
    return %arg0, %c0_i32 : i32, i32
  }
  func.func @transform_1(%arg0: i32) -> (i32, i32) {
    %c0_i32 = arith.constant 0 : i32
    %c0_i32_0 = arith.constant 0 : i32
    %c0_i32_1 = arith.constant 0 : i32
    return %c0_i32, %c0_i32_0 : i32, i32
  }
  func.func @transform_2(%arg0: i32) -> (i32, i32) {
    %c0_i32 = arith.constant 0 : i32
    %c0_i32_0 = arith.constant 0 : i32
    %c0_i32_1 = arith.constant 0 : i32
    return %c0_i32, %c0_i32_0 : i32, i32
  }
  func.func @transform_3(%arg0: i32) -> (i32, i32) {
    %c0_i32 = arith.constant 0 : i32
    %c0_i32_0 = arith.constant 0 : i32
    %c0_i32_1 = arith.constant 0 : i32
    return %c0_i32, %c0_i32_0 : i32, i32
  }
  func.func @transform_4(%arg0: i32) -> (i32, i32) {
    %c0_i32 = arith.constant 0 : i32
    %c0_i32_0 = arith.constant 0 : i32
    %c0_i32_1 = arith.constant 0 : i32
    return %c0_i32, %c0_i32_0 : i32, i32
  }
  func.func @transform_5(%arg0: i32) -> (i32, i32) {
    %c0_i32 = arith.constant 0 : i32
    %c0_i32_0 = arith.constant 0 : i32
    %c0_i32_1 = arith.constant 0 : i32
    return %c0_i32, %c0_i32_0 : i32, i32
  }
  func.func @transform_6(%arg0: i32) -> (i32, i32) {
    %c0_i32 = arith.constant 0 : i32
    %c0_i32_0 = arith.constant 0 : i32
    %c0_i32_1 = arith.constant 0 : i32
    return %c0_i32, %c0_i32_0 : i32, i32
  }
  func.func @transform_7(%arg0: i32) -> (i32, i32) {
    %c0_i32 = arith.constant 0 : i32
    %c0_i32_0 = arith.constant 0 : i32
    return %arg0, %c0_i32 : i32, i32
  }
}

</mosaic_0001>

<llo_original>
// kernel: actor_forward.1
$region0: #{actor_forward.1}
  #allocation0 [shape = 'u32[]', space=smem, size = 0x4, offset = 0x4, fixed_abs, tag = 'smem constant byte address 0x4 - core index']
  #allocation1 [shape = 'u32[144,128]{1,0:T(1,128)}', space=vmem, size = 0x12000, scoped, tag = 'internal scratch']
  %s0 = inlined_call_operand.vmem [shape: f32[2,16], index: 0, kind: input, shape index: {}]
  %s1 = inlined_call_operand.vmem [shape: bf16[16,512], index: 1, kind: input, shape index: {}]
  %s2 = inlined_call_operand.vmem [shape: f32[1,512], index: 2, kind: input, shape index: {}]
  %s3 = inlined_call_operand.hbm [shape: bf16[512,256], index: 3, kind: input, shape index: {}]
  %s4 = inlined_call_operand.vmem [shape: f32[1,256], index: 4, kind: input, shape index: {}]
  %s5 = inlined_call_operand.vmem [shape: bf16[256,4], index: 5, kind: input, shape index: {}]
  %s6 = inlined_call_operand.vmem [shape: f32[1,4], index: 6, kind: input, shape index: {}]
  %s7 = inlined_call_operand.hbm [shape: f32[2,4], index: 7, kind: output, shape index: {}]
  %s8 = sld [smem:[#allocation0]]
  $region42: #{actor_forward.1} parent=0
    _
  %s10 = ssub.s32 1, %s8
  %s11 = scalar_select 0, %s10, %s8
  $region1: #{actor_forward.1} parent=0
    #allocation2 [shape = 'u8[262144]{0}', space=vmem, size = 0x40000, scoped, tag = 'input window, operand 3, single buffered']
    #allocation3 [shape = 's32[1]{0}', space=sflag, size = 0x4, scoped, tag = 'scoped memory for actor_forward.1']
    #allocation4 [shape = 's32[1]{0}', space=sflag, size = 0x4, scoped, tag = 'scoped memory for actor_forward.1']
    #allocation5 [shape = 'u8[1024]{0}', space=vmem, size = 0x400, scoped, tag = 'output window, operand 0, single buffered']
    %12 = vsyncpa [#allocation3], 0
    %13 = vsyncpa [#allocation4], 0
    // Predicated region
    $region2: #{actor_forward.1} parent=1 // pred_check
      _
    $region3: #{actor_forward.1} parent=1 // pred_check_branch
      %15 = sbr.rel (0) target = $region5
    $region4: #{actor_forward.1} parent=1 // pred_region
      _
    $region5: #{actor_forward.1} parent=1 // pred_fallthru
      _
    // Predicated region
    $region6: #{actor_forward.1} parent=1 // pred_check
      _
    $region7: #{actor_forward.1} parent=1 // pred_check_branch
      %17 = sbr.rel (0) target = $region9
    $region8: #{actor_forward.1} parent=1 // pred_region
      _
    $region9: #{actor_forward.1} parent=1 // pred_fallthru
      _
    // Predicated region
    $region10: #{actor_forward.1} parent=1 // pred_check
      _
    $region11: #{actor_forward.1} parent=1 // pred_check_branch
      %19 = sbr.rel (0) target = $region13
    $region12: #{actor_forward.1} parent=1 // pred_region
      _
    $region13: #{actor_forward.1} parent=1 // pred_fallthru
      _
    // Predicated region
    $region14: #{actor_forward.1} parent=1 // pred_check
      _
    $region15: #{actor_forward.1} parent=1 // pred_check_branch
      %21 = sbr.rel (0) target = $region17
    $region16: #{actor_forward.1} parent=1 // pred_region
      %s23 = ssub.s32 8192, 8192
      %24 = vsyncadd [#allocation3], %s23
      %s25 = sshll.u32 [#allocation2], 4
      %s26 = int_to_ptr.vmem [resolvable:$true] %s25
      %31 = dma.hbm_to_vmem [thread:$0]  %s3, 8192, %s26, [#allocation3], 128, 128, 8
    $region17: #{actor_forward.1} parent=1 // pred_fallthru
      _
    // Predicated region
    $region18: #{actor_forward.1} parent=1 // pred_check
      _
    $region19: #{actor_forward.1} parent=1 // pred_check_branch
      %33 = sbr.rel (0) target = $region21
    $region20: #{actor_forward.1} parent=1 // pred_region
      _
    $region21: #{actor_forward.1} parent=1 // pred_fallthru
      _
    // Predicated region
    $region22: #{actor_forward.1} parent=1 // pred_check
      _
    $region23: #{actor_forward.1} parent=1 // pred_check_branch
      %35 = sbr.rel (0) target = $region25
    $region24: #{actor_forward.1} parent=1 // pred_region
      _
    $region25: #{actor_forward.1} parent=1 // pred_fallthru
      _
    // Predicated region
    $region26: #{actor_forward.1} parent=1 // pred_check
      _
    $region27: #{actor_forward.1} parent=1 // pred_check_branch
      %37 = sbr.rel (0) target = $region29
    $region28: #{actor_forward.1} parent=1 // pred_region
      _
    $region29: #{actor_forward.1} parent=1 // pred_fallthru
      _
    // Predicated region
    $region30: #{actor_forward.1} parent=1 // pred_check
      _
    $region31: #{actor_forward.1} parent=1 // pred_check_branch
      %39 = sbr.rel (0) target = $region33
    $region32: #{actor_forward.1} parent=1 // pred_region
      %40 = dma.done [#allocation3], 8192
    $region33: #{actor_forward.1} parent=1 // pred_fallthru
      _
    %v42 = vld [vmem:[%s0] sm:$0x3]
    %v43 = vpack.c.bf16 %v42, %v42
    %v44 = vld [vmem:[%s1] sm:$0xff]
    %v45 = vld [vmem:[%s1 + $0x8] sm:$0xff]
    %v46 = vld [vmem:[%s1 + $0x10] sm:$0xff]
    %v47 = vld [vmem:[%s1 + $0x18] sm:$0xff]
    %v48 = vld [vmem:[%s2] sm:$0xf]
    %v50 = vlaneseq
    %v51 = vshrl.u32 %v50, 7
    %v52 = vsub.s32 0, %v51
    %v53 = vrot.slane %v48, %v52
    %v54 = vlaneseq
    %v55 = vshrl.u32 %v54, 7
    %v56 = vsub.s32 1, %v55
    %v57 = vrot.slane %v48, %v56
    %v58 = vlaneseq
    %v59 = vshrl.u32 %v58, 7
    %v60 = vsub.s32 2, %v59
    %v61 = vrot.slane %v48, %v60
    %v62 = vlaneseq
    %v63 = vshrl.u32 %v62, 7
    %v64 = vsub.s32 3, %v63
    %v65 = vrot.slane %v48, %v64
    %v74 = vunpack.c.l.b16 %v44
    %v75 = vunpack.c.h.b16 %v44
    %v76 = vunpack.c.l.b16 %v45
    %v77 = vunpack.c.h.b16 %v45
    %v78 = vunpack.c.l.b16 %v46
    %v79 = vunpack.c.h.b16 %v46
    %v80 = vunpack.c.l.b16 %v47
    %v81 = vunpack.c.h.b16 %v47
    %v82 = vpack.c.b16 %v78, %v74
    %v83 = vpack.c.b16 %v79, %v75
    %v84 = vpack.c.b16 %v80, %v76
    %v85 = vpack.c.b16 %v81, %v77
    %vm90 = vcmask 130048
    %v92 = vsel %vm90, %v43, 0
    %94 = vmatprep.subr.bf16.mxu0 %v83
    %95 = vmatpush1.bf16.msra.mxu0 %v82
    %96 = vmatprep.subr.bf16.mxu0 0
    %97 = vmatpush1.bf16.msra.mxu0 0
    %98 = vmatprep.subr.bf16.mxu0 0
    %99 = vmatpush1.bf16.msra.mxu0 0
    %100 = vmatprep.subr.bf16.mxu0 0
    %101 = vmatpush1.bf16.msra.mxu0 0
    %102 = vmatprep.subr.bf16.mxu0 0
    %103 = vmatpush1.bf16.msra.mxu0 0
    %104 = vmatprep.subr.bf16.mxu0 0
    %105 = vmatpush1.bf16.msra.mxu0 0
    %106 = vmatprep.subr.bf16.mxu0 0
    %107 = vmatpush1.bf16.msra.mxu0 0
    %108 = vmatprep.subr.bf16.mxu0 0
    %109 = vmatpush1.bf16.msra.mxu0 0
    %110 = vmatprep.subr.bf16.mxu0 0
    %111 = vmatpush1.bf16.msra.mxu0 0
    %112 = vmatprep.subr.bf16.mxu0 0
    %113 = vmatpush1.bf16.msra.mxu0 0
    %114 = vmatprep.subr.bf16.mxu0 0
    %115 = vmatpush1.bf16.msra.mxu0 0
    %116 = vmatprep.subr.bf16.mxu0 0
    %117 = vmatpush1.bf16.msra.mxu0 0
    %118 = vmatprep.subr.bf16.mxu0 0
    %119 = vmatpush1.bf16.msra.mxu0 0
    %120 = vmatprep.subr.bf16.mxu0 0
    %121 = vmatpush1.bf16.msra.mxu0 0
    %122 = vmatprep.subr.bf16.mxu0 0
    %123 = vmatpush1.bf16.msra.mxu0 0
    %124 = vmatprep.subr.bf16.mxu0 0
    %125 = vmatpush1.bf16.msra.mxu0 0
    %126 = vmatprep.mubr.bf16.mxu0 0
    %127 = vmatmul.mubr.bf16.gmra.mrb[0].mxu0 %v92
    %v128 = vpop.f32.mrb[0].mxu0
    %v129 = vadd.f32 %v53, %v128
    %v130 = vpop.f32.mrb[0].mxu0
    %v131 = vadd.f32 %v57, %v130
    %v132 = vpop.f32.mrb[0].mxu0
    %v133 = vpop.f32.mrb[0].mxu0
    %134 = vdwg.mxu0
    %135 = vmatprep.subr.bf16.mxu0 %v85
    %136 = vmatpush1.bf16.msra.mxu0 %v84
    %137 = vmatprep.subr.bf16.mxu0 0
    %138 = vmatpush1.bf16.msra.mxu0 0
    %139 = vmatprep.subr.bf16.mxu0 0
    %140 = vmatpush1.bf16.msra.mxu0 0
    %141 = vmatprep.subr.bf16.mxu0 0
    %142 = vmatpush1.bf16.msra.mxu0 0
    %143 = vmatprep.subr.bf16.mxu0 0
    %144 = vmatpush1.bf16.msra.mxu0 0
    %145 = vmatprep.subr.bf16.mxu0 0
    %146 = vmatpush1.bf16.msra.mxu0 0
    %147 = vmatprep.subr.bf16.mxu0 0
    %148 = vmatpush1.bf16.msra.mxu0 0
    %149 = vmatprep.subr.bf16.mxu0 0
    %150 = vmatpush1.bf16.msra.mxu0 0
    %151 = vmatprep.subr.bf16.mxu0 0
    %152 = vmatpush1.bf16.msra.mxu0 0
    %153 = vmatprep.subr.bf16.mxu0 0
    %154 = vmatpush1.bf16.msra.mxu0 0
    %155 = vmatprep.subr.bf16.mxu0 0
    %156 = vmatpush1.bf16.msra.mxu0 0
    %157 = vmatprep.subr.bf16.mxu0 0
    %158 = vmatpush1.bf16.msra.mxu0 0
    %159 = vmatprep.subr.bf16.mxu0 0
    %160 = vmatpush1.bf16.msra.mxu0 0
    %161 = vmatprep.subr.bf16.mxu0 0
    %162 = vmatpush1.bf16.msra.mxu0 0
    %163 = vmatprep.subr.bf16.mxu0 0
    %164 = vmatpush1.bf16.msra.mxu0 0
    %165 = vmatprep.subr.bf16.mxu0 0
    %166 = vmatpush1.bf16.msra.mxu0 0
    %167 = vmatprep.mubr.bf16.mxu0 0
    %168 = vmatmul.mubr.bf16.gmra.mrb[0].mxu0 %v92
    %v169 = vpop.f32.mrb[0].mxu0
    %v170 = vadd.f32 %v61, %v169
    %v171 = vpop.f32.mrb[0].mxu0
    %v172 = vadd.f32 %v65, %v171
    %v173 = vpop.f32.mrb[0].mxu0
    %v174 = vpop.f32.mrb[0].mxu0
    %175 = vdwg.mxu0
    %v176 = vmul.f32 %v129, 0.01
    %v177 = vmul.f32 %v131, 0.01
    %v178 = vmul.f32 %v170, 0.01
    %v179 = vmul.f32 %v172, 0.01
    %v180 = vmax.f32 %v129, %v176
    %v181 = vmax.f32 %v131, %v177
    %v182 = vmax.f32 %v170, %v178
    %v183 = vmax.f32 %v172, %v179
    %v184 = vpack.c.bf16 %v180, %v180
    %v185 = vpack.c.bf16 %v181, %v181
    %v186 = vpack.c.bf16 %v182, %v182
    %v187 = vpack.c.bf16 %v183, %v183
    %v188 = vld [vmem:[#allocation2] sm:$0xff]
    %v189 = vld [vmem:[#allocation2 + $0x8] sm:$0xff]
    %v190 = vld [vmem:[#allocation2 + $0x10] sm:$0xff]
    %v191 = vld [vmem:[#allocation2 + $0x18] sm:$0xff]
    %v192 = vld [vmem:[#allocation2 + $0x20] sm:$0xff]
    %v193 = vld [vmem:[#allocation2 + $0x28] sm:$0xff]
    %v194 = vld [vmem:[#allocation2 + $0x30] sm:$0xff]
    %v195 = vld [vmem:[#allocation2 + $0x38] sm:$0xff]
    %v196 = vld [vmem:[#allocation2 + $0x40] sm:$0xff]
    %v197 = vld [vmem:[#allocation2 + $0x48] sm:$0xff]
    %v198 = vld [vmem:[#allocation2 + $0x50] sm:$0xff]
    %v199 = vld [vmem:[#allocation2 + $0x58] sm:$0xff]
    %v200 = vld [vmem:[#allocation2 + $0x60] sm:$0xff]
    %v201 = vld [vmem:[#allocation2 + $0x68] sm:$0xff]
    %v202 = vld [vmem:[#allocation2 + $0x70] sm:$0xff]
    %v203 = vld [vmem:[#allocation2 + $0x78] sm:$0xff]
    %v204 = vld [vmem:[#allocation2 + $0x80] sm:$0xff]
    %v205 = vld [vmem:[#allocation2 + $0x88] sm:$0xff]
    %v206 = vld [vmem:[#allocation2 + $0x90] sm:$0xff]
    %v207 = vld [vmem:[#allocation2 + $0x98] sm:$0xff]
    %v208 = vld [vmem:[#allocation2 + $0xa0] sm:$0xff]
    %v209 = vld [vmem:[#allocation2 + $0xa8] sm:$0xff]
    %v210 = vld [vmem:[#allocation2 + $0xb0] sm:$0xff]
    %v211 = vld [vmem:[#allocation2 + $0xb8] sm:$0xff]
    %v212 = vld [vmem:[#allocation2 + $0xc0] sm:$0xff]
    %v213 = vld [vmem:[#allocation2 + $0xc8] sm:$0xff]
    %v214 = vld [vmem:[#allocation2 + $0xd0] sm:$0xff]
    %v215 = vld [vmem:[#allocation2 + $0xd8] sm:$0xff]
    %v216 = vld [vmem:[#allocation2 + $0xe0] sm:$0xff]
    %v217 = vld [vmem:[#allocation2 + $0xe8] sm:$0xff]
    %v218 = vld [vmem:[#allocation2 + $0xf0] sm:$0xff]
    %v219 = vld [vmem:[#allocation2 + $0xf8] sm:$0xff]
    %v220 = vld [vmem:[#allocation2 + $0x100] sm:$0xff]
    %v221 = vld [vmem:[#allocation2 + $0x108] sm:$0xff]
    %v222 = vld [vmem:[#allocation2 + $0x110] sm:$0xff]
    %v223 = vld [vmem:[#allocation2 + $0x118] sm:$0xff]
    %v224 = vld [vmem:[#allocation2 + $0x120] sm:$0xff]
    %v225 = vld [vmem:[#allocation2 + $0x128] sm:$0xff]
    %v226 = vld [vmem:[#allocation2 + $0x130] sm:$0xff]
    %v227 = vld [vmem:[#allocation2 + $0x138] sm:$0xff]
    %v228 = vld [vmem:[#allocation2 + $0x140] sm:$0xff]
    %v229 = vld [vmem:[#allocation2 + $0x148] sm:$0xff]
    %v230 = vld [vmem:[#allocation2 + $0x150] sm:$0xff]
    %v231 = vld [vmem:[#allocation2 + $0x158] sm:$0xff]
    %v232 = vld [vmem:[#allocation2 + $0x160] sm:$0xff]
    %v233 = vld [vmem:[#allocation2 + $0x168] sm:$0xff]
    %v234 = vld [vmem:[#allocation2 + $0x170] sm:$0xff]
    %v235 = vld [vmem:[#allocation2 + $0x178] sm:$0xff]
    %v236 = vld [vmem:[#allocation2 + $0x180] sm:$0xff]
    %v237 = vld [vmem:[#allocation2 + $0x188] sm:$0xff]
    %v238 = vld [vmem:[#allocation2 + $0x190] sm:$0xff]
    %v239 = vld [vmem:[#allocation2 + $0x198] sm:$0xff]
    %v240 = vld [vmem:[#allocation2 + $0x1a0] sm:$0xff]
    %v241 = vld [vmem:[#allocation2 + $0x1a8] sm:$0xff]
    %v242 = vld [vmem:[#allocation2 + $0x1b0] sm:$0xff]
    %v243 = vld [vmem:[#allocation2 + $0x1b8] sm:$0xff]
    %v244 = vld [vmem:[#allocation2 + $0x1c0] sm:$0xff]
    %v245 = vld [vmem:[#allocation2 + $0x1c8] sm:$0xff]
    %v246 = vld [vmem:[#allocation2 + $0x1d0] sm:$0xff]
    %v247 = vld [vmem:[#allocation2 + $0x1d8] sm:$0xff]
    %v248 = vld [vmem:[#allocation2 + $0x1e0] sm:$0xff]
    %v249 = vld [vmem:[#allocation2 + $0x1e8] sm:$0xff]
    %v250 = vld [vmem:[#allocation2 + $0x1f0] sm:$0xff]
    %v251 = vld [vmem:[#allocation2 + $0x1f8] sm:$0xff]
    %v252 = vld [vmem:[%s4] sm:$0x3]
    %v254 = vlaneseq
    %v255 = vshrl.u32 %v254, 7
    %v256 = vsub.s32 0, %v255
    %v257 = vrot.slane %v252, %v256
    %v258 = vlaneseq
    %v259 = vshrl.u32 %v258, 7
    %v260 = vsub.s32 1, %v259
    %v261 = vrot.slane %v252, %v260
    %v328 = vunpack.c.l.b16 %v188
    %v329 = vunpack.c.h.b16 %v188
    %v330 = vunpack.c.l.b16 %v189
    %v331 = vunpack.c.h.b16 %v189
    %v332 = vunpack.c.l.b16 %v190
    %v333 = vunpack.c.h.b16 %v190
    %v334 = vunpack.c.l.b16 %v191
    %v335 = vunpack.c.h.b16 %v191
    %v336 = vunpack.c.l.b16 %v192
    %v337 = vunpack.c.h.b16 %v192
    %v338 = vunpack.c.l.b16 %v193
    %v339 = vunpack.c.h.b16 %v193
    %v340 = vunpack.c.l.b16 %v194
    %v341 = vunpack.c.h.b16 %v194
    %v342 = vunpack.c.l.b16 %v195
    %v343 = vunpack.c.h.b16 %v195
    %v344 = vunpack.c.l.b16 %v196
    %v345 = vunpack.c.h.b16 %v196
    %v346 = vunpack.c.l.b16 %v197
    %v347 = vunpack.c.h.b16 %v197
    %v348 = vunpack.c.l.b16 %v198
    %v349 = vunpack.c.h.b16 %v198
    %v350 = vunpack.c.l.b16 %v199
    %v351 = vunpack.c.h.b16 %v199
    %v352 = vunpack.c.l.b16 %v200
    %v353 = vunpack.c.h.b16 %v200
    %v354 = vunpack.c.l.b16 %v201
    %v355 = vunpack.c.h.b16 %v201
    %v356 = vunpack.c.l.b16 %v202
    %v357 = vunpack.c.h.b16 %v202
    %v358 = vunpack.c.l.b16 %v203
    %v359 = vunpack.c.h.b16 %v203
    %v360 = vunpack.c.l.b16 %v204
    %v361 = vunpack.c.h.b16 %v204
    %v362 = vunpack.c.l.b16 %v205
    %v363 = vunpack.c.h.b16 %v205
    %v364 = vunpack.c.l.b16 %v206
    %v365 = vunpack.c.h.b16 %v206
    %v366 = vunpack.c.l.b16 %v207
    %v367 = vunpack.c.h.b16 %v207
    %v368 = vunpack.c.l.b16 %v208
    %v369 = vunpack.c.h.b16 %v208
    %v370 = vunpack.c.l.b16 %v209
    %v371 = vunpack.c.h.b16 %v209
    %v372 = vunpack.c.l.b16 %v210
    %v373 = vunpack.c.h.b16 %v210
    %v374 = vunpack.c.l.b16 %v211
    %v375 = vunpack.c.h.b16 %v211
    %v376 = vunpack.c.l.b16 %v212
    %v377 = vunpack.c.h.b16 %v212
    %v378 = vunpack.c.l.b16 %v213
    %v379 = vunpack.c.h.b16 %v213
    %v380 = vunpack.c.l.b16 %v214
    %v381 = vunpack.c.h.b16 %v214
    %v382 = vunpack.c.l.b16 %v215
    %v383 = vunpack.c.h.b16 %v215
    %v384 = vunpack.c.l.b16 %v216
    %v385 = vunpack.c.h.b16 %v216
    %v386 = vunpack.c.l.b16 %v217
    %v387 = vunpack.c.h.b16 %v217
    %v388 = vunpack.c.l.b16 %v218
    %v389 = vunpack.c.h.b16 %v218
    %v390 = vunpack.c.l.b16 %v219
    %v391 = vunpack.c.h.b16 %v219
    %v392 = vunpack.c.l.b16 %v220
    %v393 = vunpack.c.h.b16 %v220
    %v394 = vunpack.c.l.b16 %v221
    %v395 = vunpack.c.h.b16 %v221
    %v396 = vunpack.c.l.b16 %v222
    %v397 = vunpack.c.h.b16 %v222
    %v398 = vunpack.c.l.b16 %v223
    %v399 = vunpack.c.h.b16 %v223
    %v400 = vunpack.c.l.b16 %v224
    %v401 = vunpack.c.h.b16 %v224
    %v402 = vunpack.c.l.b16 %v225
    %v403 = vunpack.c.h.b16 %v225
    %v404 = vunpack.c.l.b16 %v226
    %v405 = vunpack.c.h.b16 %v226
    %v406 = vunpack.c.l.b16 %v227
    %v407 = vunpack.c.h.b16 %v227
    %v408 = vunpack.c.l.b16 %v228
    %v409 = vunpack.c.h.b16 %v228
    %v410 = vunpack.c.l.b16 %v229
    %v411 = vunpack.c.h.b16 %v229
    %v412 = vunpack.c.l.b16 %v230
    %v413 = vunpack.c.h.b16 %v230
    %v414 = vunpack.c.l.b16 %v231
    %v415 = vunpack.c.h.b16 %v231
    %v416 = vunpack.c.l.b16 %v232
    %v417 = vunpack.c.h.b16 %v232
    %v418 = vunpack.c.l.b16 %v233
    %v419 = vunpack.c.h.b16 %v233
    %v420 = vunpack.c.l.b16 %v234
    %v421 = vunpack.c.h.b16 %v234
    %v422 = vunpack.c.l.b16 %v235
    %v423 = vunpack.c.h.b16 %v235
    %v424 = vunpack.c.l.b16 %v236
    %v425 = vunpack.c.h.b16 %v236
    %v426 = vunpack.c.l.b16 %v237
    %v427 = vunpack.c.h.b16 %v237
    %v428 = vunpack.c.l.b16 %v238
    %v429 = vunpack.c.h.b16 %v238
    %v430 = vunpack.c.l.b16 %v239
    %v431 = vunpack.c.h.b16 %v239
    %v432 = vunpack.c.l.b16 %v240
    %v433 = vunpack.c.h.b16 %v240
    %v434 = vunpack.c.l.b16 %v241
    %v435 = vunpack.c.h.b16 %v241
    %v436 = vunpack.c.l.b16 %v242
    %v437 = vunpack.c.h.b16 %v242
    %v438 = vunpack.c.l.b16 %v243
    %v439 = vunpack.c.h.b16 %v243
    %v440 = vunpack.c.l.b16 %v244
    %v441 = vunpack.c.h.b16 %v244
    %v442 = vunpack.c.l.b16 %v245
    %v443 = vunpack.c.h.b16 %v245
    %v444 = vunpack.c.l.b16 %v246
    %v445 = vunpack.c.h.b16 %v246
    %v446 = vunpack.c.l.b16 %v247
    %v447 = vunpack.c.h.b16 %v247
    %v448 = vunpack.c.l.b16 %v248
    %v449 = vunpack.c.h.b16 %v248
    %v450 = vunpack.c.l.b16 %v249
    %v451 = vunpack.c.h.b16 %v249
    %v452 = vunpack.c.l.b16 %v250
    %v453 = vunpack.c.h.b16 %v250
    %v454 = vunpack.c.l.b16 %v251
    %v455 = vunpack.c.h.b16 %v251
    %v456 = vpack.c.b16 %v330, %v328
    %v457 = vpack.c.b16 %v331, %v329
    %v458 = vpack.c.b16 %v334, %v332
    %v459 = vpack.c.b16 %v335, %v333
    %v460 = vpack.c.b16 %v338, %v336
    %v461 = vpack.c.b16 %v339, %v337
    %v462 = vpack.c.b16 %v342, %v340
    %v463 = vpack.c.b16 %v343, %v341
    %v464 = vpack.c.b16 %v346, %v344
    %v465 = vpack.c.b16 %v347, %v345
    %v466 = vpack.c.b16 %v350, %v348
    %v467 = vpack.c.b16 %v351, %v349
    %v468 = vpack.c.b16 %v354, %v352
    %v469 = vpack.c.b16 %v355, %v353
    %v470 = vpack.c.b16 %v358, %v356
    %v471 = vpack.c.b16 %v359, %v357
    %v472 = vpack.c.b16 %v362, %v360
    %v473 = vpack.c.b16 %v363, %v361
    %v474 = vpack.c.b16 %v366, %v364
    %v475 = vpack.c.b16 %v367, %v365
    %v476 = vpack.c.b16 %v370, %v368
    %v477 = vpack.c.b16 %v371, %v369
    %v478 = vpack.c.b16 %v374, %v372
    %v479 = vpack.c.b16 %v375, %v373
    %v480 = vpack.c.b16 %v378, %v376
    %v481 = vpack.c.b16 %v379, %v377
    %v482 = vpack.c.b16 %v382, %v380
    %v483 = vpack.c.b16 %v383, %v381
    %v484 = vpack.c.b16 %v386, %v384
    %v485 = vpack.c.b16 %v387, %v385
    %v486 = vpack.c.b16 %v390, %v388
    %v487 = vpack.c.b16 %v391, %v389
    %v488 = vpack.c.b16 %v394, %v392
    %v489 = vpack.c.b16 %v395, %v393
    %v490 = vpack.c.b16 %v398, %v396
    %v491 = vpack.c.b16 %v399, %v397
    %v492 = vpack.c.b16 %v402, %v400
    %v493 = vpack.c.b16 %v403, %v401
    %v494 = vpack.c.b16 %v406, %v404
    %v495 = vpack.c.b16 %v407, %v405
    %v496 = vpack.c.b16 %v410, %v408
    %v497 = vpack.c.b16 %v411, %v409
    %v498 = vpack.c.b16 %v414, %v412
    %v499 = vpack.c.b16 %v415, %v413
    %v500 = vpack.c.b16 %v418, %v416
    %v501 = vpack.c.b16 %v419, %v417
    %v502 = vpack.c.b16 %v422, %v420
    %v503 = vpack.c.b16 %v423, %v421
    %v504 = vpack.c.b16 %v426, %v424
    %v505 = vpack.c.b16 %v427, %v425
    %v506 = vpack.c.b16 %v430, %v428
    %v507 = vpack.c.b16 %v431, %v429
    %v508 = vpack.c.b16 %v434, %v432
    %v509 = vpack.c.b16 %v435, %v433
    %v510 = vpack.c.b16 %v438, %v436
    %v511 = vpack.c.b16 %v439, %v437
    %v512 = vpack.c.b16 %v442, %v440
    %v513 = vpack.c.b16 %v443, %v441
    %v514 = vpack.c.b16 %v446, %v444
    %v515 = vpack.c.b16 %v447, %v445
    %v516 = vpack.c.b16 %v450, %v448
    %v517 = vpack.c.b16 %v451, %v449
    %v518 = vpack.c.b16 %v454, %v452
    %v519 = vpack.c.b16 %v455, %v453
    %584 = vmatprep.subr.bf16.mxu0 %v457
    %585 = vmatpush1.bf16.msra.mxu0 %v456
    %586 = vmatprep.subr.bf16.mxu0 %v459
    %587 = vmatpush1.bf16.msra.mxu0 %v458
    %588 = vmatprep.subr.bf16.mxu0 %v461
    %589 = vmatpush1.bf16.msra.mxu0 %v460
    %590 = vmatprep.subr.bf16.mxu0 %v463
    %591 = vmatpush1.bf16.msra.mxu0 %v462
    %592 = vmatprep.subr.bf16.mxu0 %v465
    %593 = vmatpush1.bf16.msra.mxu0 %v464
    %594 = vmatprep.subr.bf16.mxu0 %v467
    %595 = vmatpush1.bf16.msra.mxu0 %v466
    %596 = vmatprep.subr.bf16.mxu0 %v469
    %597 = vmatpush1.bf16.msra.mxu0 %v468
    %598 = vmatprep.subr.bf16.mxu0 %v471
    %599 = vmatpush1.bf16.msra.mxu0 %v470
    %600 = vmatprep.subr.bf16.mxu0 %v473
    %601 = vmatpush1.bf16.msra.mxu0 %v472
    %602 = vmatprep.subr.bf16.mxu0 %v475
    %603 = vmatpush1.bf16.msra.mxu0 %v474
    %604 = vmatprep.subr.bf16.mxu0 %v477
    %605 = vmatpush1.bf16.msra.mxu0 %v476
    %606 = vmatprep.subr.bf16.mxu0 %v479
    %607 = vmatpush1.bf16.msra.mxu0 %v478
    %608 = vmatprep.subr.bf16.mxu0 %v481
    %609 = vmatpush1.bf16.msra.mxu0 %v480
    %610 = vmatprep.subr.bf16.mxu0 %v483
    %611 = vmatpush1.bf16.msra.mxu0 %v482
    %612 = vmatprep.subr.bf16.mxu0 %v485
    %613 = vmatpush1.bf16.msra.mxu0 %v484
    %614 = vmatprep.subr.bf16.mxu0 %v487
    %615 = vmatpush1.bf16.msra.mxu0 %v486
    %616 = vmatprep.mubr.bf16.mxu0 %v185
    %617 = vmatmul.mubr.bf16.gmra.mrb[0].mxu0 %v184
    %v618 = vpop.f32.mrb[0].mxu0
    %v619 = vadd.f32 %v257, %v618
    %v620 = vpop.f32.mrb[0].mxu0
    %v621 = vadd.f32 %v261, %v620
    %v622 = vpop.f32.mrb[0].mxu0
    %v623 = vpop.f32.mrb[0].mxu0
    %624 = vdwg.mxu0
    %625 = vmatprep.subr.bf16.mxu0 %v489
    %626 = vmatpush1.bf16.msra.mxu0 %v488
    %627 = vmatprep.subr.bf16.mxu0 %v491
    %628 = vmatpush1.bf16.msra.mxu0 %v490
    %629 = vmatprep.subr.bf16.mxu0 %v493
    %630 = vmatpush1.bf16.msra.mxu0 %v492
    %631 = vmatprep.subr.bf16.mxu0 %v495
    %632 = vmatpush1.bf16.msra.mxu0 %v494
    %633 = vmatprep.subr.bf16.mxu0 %v497
    %634 = vmatpush1.bf16.msra.mxu0 %v496
    %635 = vmatprep.subr.bf16.mxu0 %v499
    %636 = vmatpush1.bf16.msra.mxu0 %v498
    %637 = vmatprep.subr.bf16.mxu0 %v501
    %638 = vmatpush1.bf16.msra.mxu0 %v500
    %639 = vmatprep.subr.bf16.mxu0 %v503
    %640 = vmatpush1.bf16.msra.mxu0 %v502
    %641 = vmatprep.subr.bf16.mxu0 %v505
    %642 = vmatpush1.bf16.msra.mxu0 %v504
    %643 = vmatprep.subr.bf16.mxu0 %v507
    %644 = vmatpush1.bf16.msra.mxu0 %v506
    %645 = vmatprep.subr.bf16.mxu0 %v509
    %646 = vmatpush1.bf16.msra.mxu0 %v508
    %647 = vmatprep.subr.bf16.mxu0 %v511
    %648 = vmatpush1.bf16.msra.mxu0 %v510
    %649 = vmatprep.subr.bf16.mxu0 %v513
    %650 = vmatpush1.bf16.msra.mxu0 %v512
    %651 = vmatprep.subr.bf16.mxu0 %v515
    %652 = vmatpush1.bf16.msra.mxu0 %v514
    %653 = vmatprep.subr.bf16.mxu0 %v517
    %654 = vmatpush1.bf16.msra.mxu0 %v516
    %655 = vmatprep.subr.bf16.mxu0 %v519
    %656 = vmatpush1.bf16.msra.mxu0 %v518
    %657 = vmatprep.mubr.bf16.mxu0 %v187
    %658 = vmatmul.mubr.bf16.gmra.mrb[0].mxu0 %v186
    %v659 = vpop.f32.mrb[0].mxu0
    %v660 = vadd.f32 %v619, %v659
    %v661 = vpop.f32.mrb[0].mxu0
    %v662 = vadd.f32 %v621, %v661
    %v663 = vpop.f32.mrb[0].mxu0
    %v664 = vpop.f32.mrb[0].mxu0
    %665 = vdwg.mxu0
    %v666 = vmul.f32 %v660, 0.01
    %v667 = vmul.f32 %v662, 0.01
    %v668 = vmax.f32 %v660, %v666
    %v669 = vmax.f32 %v662, %v667
    %v670 = vpack.c.bf16 %v668, %v668
    %v671 = vpack.c.bf16 %v669, %v669
    %v672 = vld [vmem:[%s5] sm:$0xf]
    %v673 = vld [vmem:[%s5 + $0x4] sm:$0xf]
    %v674 = vld [vmem:[%s5 + $0x8] sm:$0xf]
    %v675 = vld [vmem:[%s5 + $0xc] sm:$0xf]
    %v676 = vld [vmem:[%s5 + $0x10] sm:$0xf]
    %v677 = vld [vmem:[%s5 + $0x14] sm:$0xf]
    %v678 = vld [vmem:[%s5 + $0x18] sm:$0xf]
    %v679 = vld [vmem:[%s5 + $0x1c] sm:$0xf]
    %v680 = vld [vmem:[%s5 + $0x20] sm:$0xf]
    %v681 = vld [vmem:[%s5 + $0x24] sm:$0xf]
    %v682 = vld [vmem:[%s5 + $0x28] sm:$0xf]
    %v683 = vld [vmem:[%s5 + $0x2c] sm:$0xf]
    %v684 = vld [vmem:[%s5 + $0x30] sm:$0xf]
    %v685 = vld [vmem:[%s5 + $0x34] sm:$0xf]
    %v686 = vld [vmem:[%s5 + $0x38] sm:$0xf]
    %v687 = vld [vmem:[%s5 + $0x3c] sm:$0xf]
    %v688 = vld [vmem:[%s5 + $0x40] sm:$0xf]
    %v689 = vld [vmem:[%s5 + $0x44] sm:$0xf]
    %v690 = vld [vmem:[%s5 + $0x48] sm:$0xf]
    %v691 = vld [vmem:[%s5 + $0x4c] sm:$0xf]
    %v692 = vld [vmem:[%s5 + $0x50] sm:$0xf]
    %v693 = vld [vmem:[%s5 + $0x54] sm:$0xf]
    %v694 = vld [vmem:[%s5 + $0x58] sm:$0xf]
    %v695 = vld [vmem:[%s5 + $0x5c] sm:$0xf]
    %v696 = vld [vmem:[%s5 + $0x60] sm:$0xf]
    %v697 = vld [vmem:[%s5 + $0x64] sm:$0xf]
    %v698 = vld [vmem:[%s5 + $0x68] sm:$0xf]
    %v699 = vld [vmem:[%s5 + $0x6c] sm:$0xf]
    %v700 = vld [vmem:[%s5 + $0x70] sm:$0xf]
    %v701 = vld [vmem:[%s5 + $0x74] sm:$0xf]
    %v702 = vld [vmem:[%s5 + $0x78] sm:$0xf]
    %v703 = vld [vmem:[%s5 + $0x7c] sm:$0xf]
    %v704 = vld [vmem:[%s6] sm:$0x1]
    %v706 = vlaneseq
    %v707 = vshrl.u32 %v706, 7
    %v708 = vsub.s32 0, %v707
    %v709 = vrot.slane %v704, %v708
    %v743 = vunpack.c.l.b16 %v672
    %v744 = vunpack.c.l.b16 %v673
    %v745 = vunpack.c.l.b16 %v674
    %v746 = vunpack.c.l.b16 %v675
    %v747 = vunpack.c.l.b16 %v676
    %v748 = vunpack.c.l.b16 %v677
    %v749 = vunpack.c.l.b16 %v678
    %v750 = vunpack.c.l.b16 %v679
    %v751 = vunpack.c.l.b16 %v680
    %v752 = vunpack.c.l.b16 %v681
    %v753 = vunpack.c.l.b16 %v682
    %v754 = vunpack.c.l.b16 %v683
    %v755 = vunpack.c.l.b16 %v684
    %v756 = vunpack.c.l.b16 %v685
    %v757 = vunpack.c.l.b16 %v686
    %v758 = vunpack.c.l.b16 %v687
    %v759 = vunpack.c.l.b16 %v688
    %v760 = vunpack.c.l.b16 %v689
    %v761 = vunpack.c.l.b16 %v690
    %v762 = vunpack.c.l.b16 %v691
    %v763 = vunpack.c.l.b16 %v692
    %v764 = vunpack.c.l.b16 %v693
    %v765 = vunpack.c.l.b16 %v694
    %v766 = vunpack.c.l.b16 %v695
    %v767 = vunpack.c.l.b16 %v696
    %v768 = vunpack.c.l.b16 %v697
    %v769 = vunpack.c.l.b16 %v698
    %v770 = vunpack.c.l.b16 %v699
    %v771 = vunpack.c.l.b16 %v700
    %v772 = vunpack.c.l.b16 %v701
    %v773 = vunpack.c.l.b16 %v702
    %v774 = vunpack.c.l.b16 %v703
    %v775 = vpack.c.b16 %v744, %v743
    %v776 = vpack.c.b16 %v746, %v745
    %v777 = vpack.c.b16 %v748, %v747
    %v778 = vpack.c.b16 %v750, %v749
    %v779 = vpack.c.b16 %v752, %v751
    %v780 = vpack.c.b16 %v754, %v753
    %v781 = vpack.c.b16 %v756, %v755
    %v782 = vpack.c.b16 %v758, %v757
    %v783 = vpack.c.b16 %v760, %v759
    %v784 = vpack.c.b16 %v762, %v761
    %v785 = vpack.c.b16 %v764, %v763
    %v786 = vpack.c.b16 %v766, %v765
    %v787 = vpack.c.b16 %v768, %v767
    %v788 = vpack.c.b16 %v770, %v769
    %v789 = vpack.c.b16 %v772, %v771
    %v790 = vpack.c.b16 %v774, %v773
    %807 = vmatprep.subr.bf16.mxu0 0
    %808 = vmatpush1.bf16.msra.mxu0 %v775
    %809 = vmatprep.subr.bf16.mxu0 0
    %810 = vmatpush1.bf16.msra.mxu0 %v776
    %811 = vmatprep.subr.bf16.mxu0 0
    %812 = vmatpush1.bf16.msra.mxu0 %v777
    %813 = vmatprep.subr.bf16.mxu0 0
    %814 = vmatpush1.bf16.msra.mxu0 %v778
    %815 = vmatprep.subr.bf16.mxu0 0
    %816 = vmatpush1.bf16.msra.mxu0 %v779
    %817 = vmatprep.subr.bf16.mxu0 0
    %818 = vmatpush1.bf16.msra.mxu0 %v780
    %819 = vmatprep.subr.bf16.mxu0 0
    %820 = vmatpush1.bf16.msra.mxu0 %v781
    %821 = vmatprep.subr.bf16.mxu0 0
    %822 = vmatpush1.bf16.msra.mxu0 %v782
    %823 = vmatprep.subr.bf16.mxu0 0
    %824 = vmatpush1.bf16.msra.mxu0 %v783
    %825 = vmatprep.subr.bf16.mxu0 0
    %826 = vmatpush1.bf16.msra.mxu0 %v784
    %827 = vmatprep.subr.bf16.mxu0 0
    %828 = vmatpush1.bf16.msra.mxu0 %v785
    %829 = vmatprep.subr.bf16.mxu0 0
    %830 = vmatpush1.bf16.msra.mxu0 %v786
    %831 = vmatprep.subr.bf16.mxu0 0
    %832 = vmatpush1.bf16.msra.mxu0 %v787
    %833 = vmatprep.subr.bf16.mxu0 0
    %834 = vmatpush1.bf16.msra.mxu0 %v788
    %835 = vmatprep.subr.bf16.mxu0 0
    %836 = vmatpush1.bf16.msra.mxu0 %v789
    %837 = vmatprep.subr.bf16.mxu0 0
    %838 = vmatpush1.bf16.msra.mxu0 %v790
    %839 = vmatprep.mubr.bf16.mxu0 %v671
    %840 = vmatmul.mubr.bf16.gmra.mrb[0].mxu0 %v670
    %v841 = vpop.f32.mrb[0].mxu0
    %v842 = vadd.f32 %v709, %v841
    %v843 = vpop.f32.mrb[0].mxu0
    %v844 = vpop.f32.mrb[0].mxu0
    %v845 = vpop.f32.mrb[0].mxu0
    %846 = vdwg.mxu0
    %v847 = vtanh.pop %v842
    %v848 = vmul.f32 %v847, 2.0
    %vm849 = vcmask 25600
    %850 = vst.msk [vmem:[#allocation5] sm:$0x3] %vm849, %v848
    // Predicated region
    $region34: #{actor_forward.1} parent=1 // pred_check
      _
    $region35: #{actor_forward.1} parent=1 // pred_check_branch
      %852 = sbr.rel (0) target = $region37
    $region36: #{actor_forward.1} parent=1 // pred_region
      %s854 = ssub.s32 32, 32
      %855 = vsyncadd [#allocation4], %s854
      %s857 = sshll.u32 [#allocation5], 4
      %s858 = int_to_ptr.vmem [resolvable:$true] %s857
      %860 = dma.vmem_to_hbm [thread:$0]  %s858, 32, %s7, [#allocation4]
    $region37: #{actor_forward.1} parent=1 // pred_fallthru
      _
    // Predicated region
    $region38: #{actor_forward.1} parent=1 // pred_check
      _
    $region39: #{actor_forward.1} parent=1 // pred_check_branch
      %862 = sbr.rel (0) target = $region41
    $region40: #{actor_forward.1} parent=1 // pred_region
      %863 = dma.done [#allocation4], 32
    $region41: #{actor_forward.1} parent=1 // pred_fallthru
      _
    %864 = vsyncpa [#allocation3], 1
    %865 = vsyncpa [#allocation4], 1

</llo_original>
